<compile_context>
chip_gen: v7x
topology: tpu7x:2x2x1
jax: 0.10.0
libtpu: 0.0.40
codegen_flags: <defaults>
</compile_context>

<pallas_src>
import jax
import jax.numpy as jnp
from jax.experimental import pallas as pl
from jax.experimental.pallas import tpu as pltpu


def _round_up(a, m):
    return ((a + m - 1) // m) * m


def _cdiv(a, b):
    return -(-a // b)


# ----------------------------------------------------------------------------- kernels
def _ffn_kernel_inplace(x_ref, w1_ref, b1_ref, w2_ref, b2_ref, o_ref):
    """f32 output: accumulate directly into the resident output block."""
    k = pl.program_id(1)

    @pl.when(k == 0)
    def _init():
        o_ref[...] = jnp.broadcast_to(b2_ref[...], o_ref.shape)

    # linear_1 tile: (tm, d_model) @ (d_model, tk) on the MXU (bf16 in, f32 out)
    h = jnp.dot(x_ref[...], w1_ref[...], preferred_element_type=jnp.float32)
    h = jnp.maximum(h + b1_ref[...], 0.0)            # bias + relu on the VPU
    # dropout (eval mode) -> identity
    # linear_2 partial: (tm, tk) @ (tk, d_model), f32 accumulation into o_ref
    o_ref[...] += jnp.dot(h.astype(jnp.bfloat16), w2_ref[...],
                          preferred_element_type=jnp.float32)


def _ffn_kernel_scratch(x_ref, w1_ref, b1_ref, w2_ref, b2_ref, o_ref, acc_ref):
    """non-f32 output: f32 scratch accumulator, single cast at the end."""
    k = pl.program_id(1)

    @pl.when(k == 0)
    def _init():
        acc_ref[...] = jnp.broadcast_to(b2_ref[...], acc_ref.shape)

    h = jnp.dot(x_ref[...], w1_ref[...], preferred_element_type=jnp.float32)
    h = jnp.maximum(h + b1_ref[...], 0.0)
    acc_ref[...] += jnp.dot(h.astype(jnp.bfloat16), w2_ref[...],
                            preferred_element_type=jnp.float32)

    @pl.when(k == pl.num_programs(1) - 1)
    def _finalize():
        o_ref[...] = acc_ref[...].astype(o_ref.dtype)


# ----------------------------------------------------------------------------- tiling
def _vmem_budget_bytes():
    """Physical-VMEM-aware budget: ~56 MiB on v7x (64 MiB), ~100 MiB on v5e/v6e."""
    cap = 128 << 20
    try:
        info = pltpu.get_tpu_info()
        c = getattr(info, "vmem_capacity_bytes", None)
        if c:
            cap = int(c)
    except Exception:
        pass
    return max(min(cap - (8 << 20), 100 << 20), 16 << 20)


def _est_vmem(tm, tk, d_model_p, out_itemsize, use_scratch):
    b = 2 * tm * d_model_p * 2                 # x tiles (bf16, double buffered)
    b += 2 * d_model_p * tk * 2                # W1 tiles (bf16)
    b += 2 * tk * d_model_p * 2                # W2 tiles (bf16)
    b += 2 * tk * 4 + 2 * d_model_p * 4        # bias tiles (f32)
    b += 2 * tm * d_model_p * out_itemsize     # output tiles
    if use_scratch:
        b += tm * d_model_p * 4                # f32 accumulator
    return b


def _choose_tiles(rows, d_model_p, d_ff_p, tm_req, tk_req, out_itemsize,
                  use_scratch, budget):
    rows_8 = _round_up(rows, 8)
    n_row_tiles = max(1, _cdiv(rows_8, tm_req))
    if n_row_tiles == 1 and rows_8 > 512:
        n_row_tiles = 2                        # keep both TCs busy on v7x megacore
    tm = _round_up(_cdiv(rows_8, n_row_tiles), 8)

    tk_opts = [t for t in range(128, min(tk_req, d_ff_p) + 1, 128) if d_ff_p % t == 0]
    tk_opts = tk_opts[::-1] or [d_ff_p]
    ti = 0
    tk = tk_opts[ti]
    # shrink tk first (DMA granularity only), protect tm (the intensity lever)
    while (_est_vmem(tm, tk, d_model_p, out_itemsize, use_scratch) > budget
           and ti + 1 < len(tk_opts)):
        ti += 1
        tk = tk_opts[ti]
    while _est_vmem(tm, tk, d_model_p, out_itemsize, use_scratch) > budget and tm > 8:
        tm = max(8, _round_up(tm // 2, 8))
    return tm, tk


# ----------------------------------------------------------------------------- wrapper
def prepare_params(w1, b1, w2, b2):
    """One-time weight prep (pad + bf16 cast) -> hoisted out of the per-call path.

    w1: (d_model, d_ff), b1: (d_ff,), w2: (d_ff, d_model), b2: (d_model,)
    (i.e. transposed nn.Linear weights).
    """
    d_model, d_ff = w1.shape
    d_model_p = _round_up(d_model, 128)
    d_ff_p = _round_up(d_ff, 128)
    w1p = jnp.pad(w1, ((0, d_model_p - d_model), (0, d_ff_p - d_ff))).astype(jnp.bfloat16)
    b1p = jnp.pad(b1, (0, d_ff_p - d_ff)).reshape(1, d_ff_p).astype(jnp.float32)
    w2p = jnp.pad(w2, ((0, d_ff_p - d_ff), (0, d_model_p - d_model))).astype(jnp.bfloat16)
    b2p = jnp.pad(b2, (0, d_model_p - d_model)).reshape(1, d_model_p).astype(jnp.float32)
    return dict(w1=w1p, b1=b1p, w2=w2p, b2=b2p,
                d_model=d_model, d_ff=d_ff, d_model_p=d_model_p, d_ff_p=d_ff_p)


def _ffn_apply(x, params, *, tm=1024, tk=512, out_dtype=None):
    batch, seq, d_model = x.shape
    assert d_model == params["d_model"]
    d_model_p, d_ff_p = params["d_model_p"], params["d_ff_p"]
    rows = batch * seq

    out_dtype = jnp.dtype(out_dtype or x.dtype)
    use_scratch = out_dtype != jnp.dtype(jnp.float32)

    budget = _vmem_budget_bytes()
    tm, tk = _choose_tiles(rows, d_model_p, d_ff_p, tm, tk,
                           out_dtype.itemsize, use_scratch, budget)
    rows_p = _round_up(rows, tm)

    # x: pad once, cast to bf16 once (halves x HBM read + x-tile VMEM).
    x2d = x.reshape(rows, d_model)
    x2d = jnp.pad(x2d, ((0, rows_p - rows), (0, d_model_p - d_model)))
    x2d = x2d.astype(jnp.bfloat16)

    grid = (rows_p // tm, d_ff_p // tk)
    n_row_tiles = grid[0]

    est_vmem = _est_vmem(tm, tk, d_model_p, out_dtype.itemsize, use_scratch)
    vmem_limit = int(min(budget, max(est_vmem + (8 << 20), 32 << 20)))

    w1p, b1p, w2p, b2p = params["w1"], params["b1"], params["w2"], params["b2"]
    weight_bytes = (w1p.size + w2p.size) * 2 + (b1p.size + b2p.size) * 4
    cost = pl.CostEstimate(
        flops=4 * rows_p * d_model_p * d_ff_p,
        transcendentals=0,
        bytes_accessed=(x2d.size * 2
                        + weight_bytes * n_row_tiles      # weights re-streamed per row tile
                        + rows_p * d_model_p * out_dtype.itemsize),
    )

    kernel = _ffn_kernel_scratch if use_scratch else _ffn_kernel_inplace
    scratch = [pltpu.VMEM((tm, d_model_p), jnp.float32)] if use_scratch else []

    out2d = pl.pallas_call(
        kernel,
        out_shape=jax.ShapeDtypeStruct((rows_p, d_model_p), out_dtype),
        grid_spec=pltpu.PrefetchScalarGridSpec(
            num_scalar_prefetch=0,
            grid=grid,
            in_specs=[
                pl.BlockSpec((tm, d_model_p), lambda i, k: (i, 0)),   # x row tile (resident over k)
                pl.BlockSpec((d_model_p, tk), lambda i, k: (0, k)),   # W1 d_ff slice
                pl.BlockSpec((1, tk), lambda i, k: (0, k)),           # b1 slice
                pl.BlockSpec((tk, d_model_p), lambda i, k: (k, 0)),   # W2 d_ff slice
                pl.BlockSpec((1, d_model_p), lambda i, k: (0, 0)),    # b2 (full)
            ],
            out_specs=pl.BlockSpec((tm, d_model_p), lambda i, k: (i, 0)),
            scratch_shapes=scratch,
        ),
        compiler_params=pltpu.CompilerParams(
            dimension_semantics=("parallel", "arbitrary"),
            vmem_limit_bytes=vmem_limit,
        ),
        cost_estimate=cost,
    )(x2d, w1p, b1p, w2p, b2p)

    return out2d[:rows, :d_model].reshape(batch, seq, d_model)


def make_feed_forward(w1, b1, w2, b2, *, tm=1024, tk=512, out_dtype=None):
    """Prepare weights once (model load) and return a callable x -> FFN(x)."""
    params = prepare_params(w1, b1, w2, b2)

    def apply(x):
        return _ffn_apply(x, params, tm=tm, tk=tk, out_dtype=out_dtype)

    return apply


def feed_forward_block(x, w1, b1, w2, b2, *, tm=1024, tk=512, out_dtype=None):
    """One-shot convenience wrapper (weight prep included every call; prefer
    make_feed_forward when the block is applied repeatedly)."""
    return _ffn_apply(x, prepare_params(w1, b1, w2, b2), tm=tm, tk=tk, out_dtype=out_dtype)


# ----------------------------------------------------------------------------- test
def _reference(x, w1, b1, w2, b2):
    h = jnp.maximum(x @ w1 + b1, 0.0)
    return h @ w2 + b2


if __name__ == "__main__":
    # Small shapes consistent with the module's forward.
    batch, seq, d_model, d_ff = 2, 8, 32, 64
    dropout_rate = 0.1  # unused at inference (dropout = identity)

    key = jax.random.PRNGKey(0)
    kx, k1, k2, k3, k4 = jax.random.split(key, 5)

    x = jax.random.normal(kx, (batch, seq, d_model), dtype=jnp.float32)

    # Deterministic init, mimicking nn.Linear's uniform(-1/sqrt(fan_in), 1/sqrt(fan_in)).
    lim1 = 1.0 / (d_model ** 0.5)
    lim2 = 1.0 / (d_ff ** 0.5)
    w1 = jax.random.uniform(k1, (d_model, d_ff), jnp.float32, -lim1, lim1)
    b1 = jax.random.uniform(k2, (d_ff,), jnp.float32, -lim1, lim1)
    w2 = jax.random.uniform(k3, (d_ff, d_model), jnp.float32, -lim2, lim2)
    b2 = jax.random.uniform(k4, (d_model,), jnp.float32, -lim2, lim2)

    ref = _reference(x, w1, b1, w2, b2)

    # f32-output path (in-place accumulation into the resident output block).
    ffn = make_feed_forward(w1, b1, w2, b2)     # weights prepped once
    out = jax.block_until_ready(ffn(x))
    assert out.shape == (batch, seq, d_model)
    assert out.dtype == x.dtype
    # bf16 MXU operands with f32 accumulation -> loosened tolerance vs f32 ref.
    assert jnp.allclose(out, ref, atol=2e-2, rtol=2e-2), "f32 path mismatch vs reference"

    # bf16-output path (f32 scratch accumulator, halves output writeback traffic).
    ffn_bf16 = make_feed_forward(w1, b1, w2, b2, out_dtype=jnp.bfloat16)
    out_bf16 = jax.block_until_ready(ffn_bf16(x))
    assert out_bf16.dtype == jnp.bfloat16
    assert jnp.allclose(out_bf16.astype(jnp.float32), ref, atol=6e-2, rtol=6e-2), \
        "bf16 path mismatch vs reference"

    print("KERNEL_OK")
</pallas_src>

<mosaic_0001>
module attributes {stable_mosaic.version = 11 : i64} {
  func.func @_ffn_kernel_inplace(%arg0: i32, %arg1: i32, %arg2: memref<16x128xbf16, #tpu.memory_space<vmem>>, %arg3: memref<128x128xbf16, #tpu.memory_space<vmem>>, %arg4: memref<1x128xf32, #tpu.memory_space<vmem>>, %arg5: memref<128x128xbf16, #tpu.memory_space<vmem>>, %arg6: memref<1x128xf32, #tpu.memory_space<vmem>>, %arg7: memref<16x128xf32, #tpu.memory_space<vmem>>) attributes {dimension_semantics = [#tpu.dimension_semantics<parallel>, #tpu.dimension_semantics<arbitrary>], iteration_bounds = array<i64: 1, 1>, scalar_prefetch = 0 : i64, scratch_operands = 0 : i64, tpu.core_type = #tpu.core_type<tc>, window_params = [{transform_indices = @transform_0, window_bounds = array<i64: 16, 128>}, {transform_indices = @transform_1, window_bounds = array<i64: 128, 128>}, {transform_indices = @transform_2, window_bounds = array<i64: 1, 128>}, {transform_indices = @transform_3, window_bounds = array<i64: 128, 128>}, {pipeline_mode = #tpu.pipeline_mode<synchronous>, transform_indices = @transform_4, window_bounds = array<i64: 1, 128>}, {transform_indices = @transform_5, window_bounds = array<i64: 16, 128>}]} {
    %c0_i32 = arith.constant 0 : i32
    %0 = arith.cmpi eq, %arg1, %c0_i32 : i32
    %1 = arith.extui %0 : i1 to i32
    %c0_i32_0 = arith.constant 0 : i32
    %2 = arith.cmpi ne, %1, %c0_i32_0 : i32
    scf.if %2 {
      %c0_14 = arith.constant 0 : index
      %c0_15 = arith.constant 0 : index
      %17 = vector.load %arg6[%c0_14, %c0_15] : memref<1x128xf32, #tpu.memory_space<vmem>>, vector<1x128xf32>
      %18 = vector.shape_cast %17 : vector<1x128xf32> to vector<1x128xf32>
      %19 = vector.broadcast %18 : vector<1x128xf32> to vector<16x128xf32>
      %c0_16 = arith.constant 0 : index
      %c0_17 = arith.constant 0 : index
      %20 = vector.load %arg7[%c0_16, %c0_17] : memref<16x128xf32, #tpu.memory_space<vmem>>, vector<16x128xf32>
      tpu.vector_store %arg7[%c0_16, %c0_17], %19 {strides = array<i32>} : memref<16x128xf32, #tpu.memory_space<vmem>>, vector<16x128xf32>,
    } else {
    }
    %c0 = arith.constant 0 : index
    %c0_1 = arith.constant 0 : index
    %3 = vector.load %arg2[%c0, %c0_1] : memref<16x128xbf16, #tpu.memory_space<vmem>>, vector<16x128xbf16>
    %c0_2 = arith.constant 0 : index
    %c0_3 = arith.constant 0 : index
    %4 = vector.load %arg3[%c0_2, %c0_3] : memref<128x128xbf16, #tpu.memory_space<vmem>>, vector<128x128xbf16>
    %cst = arith.constant dense<0.000000e+00> : vector<16x128xf32>
    %5 = tpu.matmul %3, %4, %cst {dimension_numbers = #tpu.dot_dimension_numbers<[1], [0], [0], [1], [0, 0, 1, 1], [], []>} : vector<16x128xbf16>, vector<128x128xbf16>, vector<16x128xf32> -> vector<16x128xf32>
    %c0_4 = arith.constant 0 : index
    %c0_5 = arith.constant 0 : index
    %6 = vector.load %arg4[%c0_4, %c0_5] : memref<1x128xf32, #tpu.memory_space<vmem>>, vector<1x128xf32>
    %7 = vector.broadcast %6 : vector<1x128xf32> to vector<16x128xf32>
    %8 = arith.addf %5, %7 : vector<16x128xf32>
    %cst_6 = arith.constant 0.000000e+00 : f32
    %9 = vector.broadcast %cst_6 : f32 to vector<16x128xf32>
    %10 = arith.maximumf %8, %9 : vector<16x128xf32>
    %c0_7 = arith.constant 0 : index
    %c0_8 = arith.constant 0 : index
    %11 = vector.load %arg7[%c0_7, %c0_8] : memref<16x128xf32, #tpu.memory_space<vmem>>, vector<16x128xf32>
    %12 = arith.truncf %10 : vector<16x128xf32> to vector<16x128xbf16>
    %c0_9 = arith.constant 0 : index
    %c0_10 = arith.constant 0 : index
    %13 = vector.load %arg5[%c0_9, %c0_10] : memref<128x128xbf16, #tpu.memory_space<vmem>>, vector<128x128xbf16>
    %cst_11 = arith.constant dense<0.000000e+00> : vector<16x128xf32>
    %14 = tpu.matmul %12, %13, %cst_11 {dimension_numbers = #tpu.dot_dimension_numbers<[1], [0], [0], [1], [0, 0, 1, 1], [], []>} : vector<16x128xbf16>, vector<128x128xbf16>, vector<16x128xf32> -> vector<16x128xf32>
    %15 = arith.addf %11, %14 : vector<16x128xf32>
    %c0_12 = arith.constant 0 : index
    %c0_13 = arith.constant 0 : index
    %16 = vector.load %arg7[%c0_12, %c0_13] : memref<16x128xf32, #tpu.memory_space<vmem>>, vector<16x128xf32>
    tpu.vector_store %arg7[%c0_12, %c0_13], %15 {strides = array<i32>} : memref<16x128xf32, #tpu.memory_space<vmem>>, vector<16x128xf32>,
    return
  }
  func.func @transform_0(%arg0: i32, %arg1: i32) -> (i32, i32) {
    %c0_i32 = arith.constant 0 : i32
    %c0_i32_0 = arith.constant 0 : i32
    return %arg0, %c0_i32 : i32, i32
  }
  func.func @transform_1(%arg0: i32, %arg1: i32) -> (i32, i32) {
    %c0_i32 = arith.constant 0 : i32
    %c0_i32_0 = arith.constant 0 : i32
    return %c0_i32, %arg1 : i32, i32
  }
  func.func @transform_2(%arg0: i32, %arg1: i32) -> (i32, i32) {
    %c0_i32 = arith.constant 0 : i32
    %c0_i32_0 = arith.constant 0 : i32
    return %c0_i32, %arg1 : i32, i32
  }
  func.func @transform_3(%arg0: i32, %arg1: i32) -> (i32, i32) {
    %c0_i32 = arith.constant 0 : i32
    %c0_i32_0 = arith.constant 0 : i32
    return %arg1, %c0_i32 : i32, i32
  }
  func.func @transform_4(%arg0: i32, %arg1: i32) -> (i32, i32) {
    %c0_i32 = arith.constant 0 : i32
    %c0_i32_0 = arith.constant 0 : i32
    %c0_i32_1 = arith.constant 0 : i32
    return %c0_i32, %c0_i32_0 : i32, i32
  }
  func.func @transform_5(%arg0: i32, %arg1: i32) -> (i32, i32) {
    %c0_i32 = arith.constant 0 : i32
    %c0_i32_0 = arith.constant 0 : i32
    return %arg0, %c0_i32 : i32, i32
  }
}

</mosaic_0001>

<llo_original>
// kernel: tpu_custom_call.1
$region0: #{tpu_custom_call.1}
  #allocation0 [shape = 'u32[]', space=smem, size = 0x4, offset = 0x4, fixed_abs, tag = 'smem constant byte address 0x4 - core index']
  #allocation1 [shape = 'u32[144,128]{1,0:T(1,128)}', space=vmem, size = 0x12000, scoped, tag = 'internal scratch']
  %s0 = inlined_call_operand.hbm [shape: bf16[16,128], index: 0, kind: input, shape index: {}]
  %s1 = inlined_call_operand.hbm [shape: bf16[128,128], index: 1, kind: input, shape index: {}]
  %s2 = inlined_call_operand.vmem [shape: f32[1,128], index: 2, kind: input, shape index: {}]
  %s3 = inlined_call_operand.hbm [shape: bf16[128,128], index: 3, kind: input, shape index: {}]
  %s4 = inlined_call_operand.vmem [shape: f32[1,128], index: 4, kind: input, shape index: {}]
  %s5 = inlined_call_operand.hbm [shape: f32[16,128], index: 5, kind: output, shape index: {}]
  %s6 = sld [smem:[#allocation0]]
  $region46: #{tpu_custom_call.1} parent=0
    _
  %s8 = ssub.s32 1, %s6
  %s9 = scalar_select 0, %s8, %s6
  $region1: #{tpu_custom_call.1} parent=0
    #allocation2 [shape = 'u8[4096]{0}', space=vmem, size = 0x1000, scoped, tag = 'input window, operand 0, single buffered']
    #allocation3 [shape = 's32[1]{0}', space=sflag, size = 0x4, scoped, tag = 'scoped memory for tpu_custom_call.1']
    #allocation4 [shape = 's32[1]{0}', space=sflag, size = 0x4, scoped, tag = 'scoped memory for tpu_custom_call.1']
    #allocation5 [shape = 'u8[32768]{0}', space=vmem, size = 0x8000, scoped, tag = 'input window, operand 1, single buffered']
    #allocation6 [shape = 's32[1]{0}', space=sflag, size = 0x4, scoped, tag = 'scoped memory for tpu_custom_call.1']
    #allocation7 [shape = 'u8[32768]{0}', space=vmem, size = 0x8000, scoped, tag = 'input window, operand 3, single buffered']
    #allocation8 [shape = 'u8[8192]{0}', space=vmem, size = 0x2000, scoped, tag = 'output window, operand 0, single buffered']
    %10 = vsyncpa [#allocation3], 0
    %11 = vsyncpa [#allocation6], 0
    %12 = vsyncpa [#allocation4], 0
    // Predicated region
    $region2: #{tpu_custom_call.1} parent=1 // pred_check
      _
    $region3: #{tpu_custom_call.1} parent=1 // pred_check_branch
      %14 = sbr.rel (0) target = $region5
    $region4: #{tpu_custom_call.1} parent=1 // pred_region
      %s16 = ssub.s32 128, 128
      %17 = vsyncadd [#allocation3], %s16
      %s18 = sshll.u32 [#allocation2], 4
      %s19 = int_to_ptr.vmem [resolvable:$true] %s18
      %24 = dma.hbm_to_vmem [thread:$0]  %s0, 128, %s19, [#allocation3], 64, 64, 4
    $region5: #{tpu_custom_call.1} parent=1 // pred_fallthru
      _
    // Predicated region
    $region6: #{tpu_custom_call.1} parent=1 // pred_check
      _
    $region7: #{tpu_custom_call.1} parent=1 // pred_check_branch
      %26 = sbr.rel (0) target = $region9
    $region8: #{tpu_custom_call.1} parent=1 // pred_region
      %s28 = ssub.s32 1024, 1024
      %29 = vsyncadd [#allocation6], %s28
      %s30 = sshll.u32 [#allocation5], 4
      %s31 = int_to_ptr.vmem [resolvable:$true] %s30
      %36 = dma.hbm_to_vmem [thread:$0]  %s1, 1024, %s31, [#allocation6], 64, 64, 4
    $region9: #{tpu_custom_call.1} parent=1 // pred_fallthru
      _
    // Predicated region
    $region10: #{tpu_custom_call.1} parent=1 // pred_check
      _
    $region11: #{tpu_custom_call.1} parent=1 // pred_check_branch
      %38 = sbr.rel (0) target = $region13
    $region12: #{tpu_custom_call.1} parent=1 // pred_region
      _
    $region13: #{tpu_custom_call.1} parent=1 // pred_fallthru
      _
    // Predicated region
    $region14: #{tpu_custom_call.1} parent=1 // pred_check
      _
    $region15: #{tpu_custom_call.1} parent=1 // pred_check_branch
      %40 = sbr.rel (0) target = $region17
    $region16: #{tpu_custom_call.1} parent=1 // pred_region
      %s42 = ssub.s32 1024, 1024
      %43 = vsyncadd [#allocation6], %s42
      %s44 = sshll.u32 [#allocation7], 4
      %s45 = int_to_ptr.vmem [resolvable:$true] %s44
      %50 = dma.hbm_to_vmem [thread:$0]  %s3, 1024, %s45, [#allocation6], 64, 64, 4
    $region17: #{tpu_custom_call.1} parent=1 // pred_fallthru
      _
    // Predicated region
    $region18: #{tpu_custom_call.1} parent=1 // pred_check
      _
    $region19: #{tpu_custom_call.1} parent=1 // pred_check_branch
      %52 = sbr.rel (0) target = $region21
    $region20: #{tpu_custom_call.1} parent=1 // pred_region
      _
    $region21: #{tpu_custom_call.1} parent=1 // pred_fallthru
      _
    // Predicated region
    $region22: #{tpu_custom_call.1} parent=1 // pred_check
      _
    $region23: #{tpu_custom_call.1} parent=1 // pred_check_branch
      %54 = sbr.rel (0) target = $region25
    $region24: #{tpu_custom_call.1} parent=1 // pred_region
      %55 = dma.done [#allocation3], 128
    $region25: #{tpu_custom_call.1} parent=1 // pred_fallthru
      _
    // Predicated region
    $region26: #{tpu_custom_call.1} parent=1 // pred_check
      _
    $region27: #{tpu_custom_call.1} parent=1 // pred_check_branch
      %57 = sbr.rel (0) target = $region29
    $region28: #{tpu_custom_call.1} parent=1 // pred_region
      %58 = dma.done [#allocation6], 1024
    $region29: #{tpu_custom_call.1} parent=1 // pred_fallthru
      _
    // Predicated region
    $region30: #{tpu_custom_call.1} parent=1 // pred_check
      _
    $region31: #{tpu_custom_call.1} parent=1 // pred_check_branch
      %60 = sbr.rel (0) target = $region33
    $region32: #{tpu_custom_call.1} parent=1 // pred_region
      %61 = dma.done [#allocation6], 1024
    $region33: #{tpu_custom_call.1} parent=1 // pred_fallthru
      _
    %p63 = scmp.eq.s32.totalorder 0, 0
    // Predicated region
    $region34: #{tpu_custom_call.1} parent=1 // pred_check
      %p64 = pneg %p63
    $region35: #{tpu_custom_call.1} parent=1 // pred_check_branch
      %66 = sbr.rel (%p64) target = $region37
    $region36: #{tpu_custom_call.1} parent=1 // pred_region
      %v67 = vld [vmem:[%s4] sm:$0x1]
      %v69 = vlaneseq
      %v70 = vshrl.u32 %v69, 7
      %v71 = vsub.s32 0, %v70
      %v72 = vrot.slane %v67, %v71
      %74 = vst [vmem:[#allocation8] sm:$0xff] %v72
      %75 = vst [vmem:[#allocation8 + $0x8] sm:$0xff] %v72
    $region37: #{tpu_custom_call.1} parent=1 // pred_fallthru
      _
    %v76 = vld [vmem:[#allocation2] sm:$0xf]
    %v77 = vld [vmem:[#allocation2 + $0x4] sm:$0xf]
    %v78 = vld [vmem:[#allocation5] sm:$0xf]
    %v79 = vld [vmem:[#allocation5 + $0x4] sm:$0xf]
    %v80 = vld [vmem:[#allocation5 + $0x8] sm:$0xf]
    %v81 = vld [vmem:[#allocation5 + $0xc] sm:$0xf]
    %v82 = vld [vmem:[#allocation5 + $0x10] sm:$0xf]
    %v83 = vld [vmem:[#allocation5 + $0x14] sm:$0xf]
    %v84 = vld [vmem:[#allocation5 + $0x18] sm:$0xf]
    %v85 = vld [vmem:[#allocation5 + $0x1c] sm:$0xf]
    %v86 = vld [vmem:[#allocation5 + $0x20] sm:$0xf]
    %v87 = vld [vmem:[#allocation5 + $0x24] sm:$0xf]
    %v88 = vld [vmem:[#allocation5 + $0x28] sm:$0xf]
    %v89 = vld [vmem:[#allocation5 + $0x2c] sm:$0xf]
    %v90 = vld [vmem:[#allocation5 + $0x30] sm:$0xf]
    %v91 = vld [vmem:[#allocation5 + $0x34] sm:$0xf]
    %v92 = vld [vmem:[#allocation5 + $0x38] sm:$0xf]
    %v93 = vld [vmem:[#allocation5 + $0x3c] sm:$0xf]
    %v94 = vld [vmem:[%s2] sm:$0x1]
    %v96 = vlaneseq
    %v97 = vshrl.u32 %v96, 7
    %v98 = vsub.s32 0, %v97
    %v99 = vrot.slane %v94, %v98
    %v103 = vunpack.c.l.b16 %v76
    %v104 = vunpack.c.l.b16 %v77
    %v105 = vpack.c.b16 %v104, %v103
    %v123 = vunpack.c.l.b16 %v78
    %v124 = vunpack.c.l.b16 %v79
    %v125 = vunpack.c.l.b16 %v80
    %v126 = vunpack.c.l.b16 %v81
    %v127 = vunpack.c.l.b16 %v82
    %v128 = vunpack.c.l.b16 %v83
    %v129 = vunpack.c.l.b16 %v84
    %v130 = vunpack.c.l.b16 %v85
    %v131 = vunpack.c.l.b16 %v86
    %v132 = vunpack.c.l.b16 %v87
    %v133 = vunpack.c.l.b16 %v88
    %v134 = vunpack.c.l.b16 %v89
    %v135 = vunpack.c.l.b16 %v90
    %v136 = vunpack.c.l.b16 %v91
    %v137 = vunpack.c.l.b16 %v92
    %v138 = vunpack.c.l.b16 %v93
    %v139 = vpack.c.b16 %v124, %v123
    %v140 = vpack.c.b16 %v126, %v125
    %v141 = vpack.c.b16 %v128, %v127
    %v142 = vpack.c.b16 %v130, %v129
    %v143 = vpack.c.b16 %v132, %v131
    %v144 = vpack.c.b16 %v134, %v133
    %v145 = vpack.c.b16 %v136, %v135
    %v146 = vpack.c.b16 %v138, %v137
    %155 = vmatprep.subr.bf16.mxu0 0
    %156 = vmatpush1.bf16.msra.mxu0 %v139
    %157 = vmatprep.subr.bf16.mxu0 0
    %158 = vmatpush1.bf16.msra.mxu0 %v140
    %159 = vmatprep.subr.bf16.mxu0 0
    %160 = vmatpush1.bf16.msra.mxu0 %v141
    %161 = vmatprep.subr.bf16.mxu0 0
    %162 = vmatpush1.bf16.msra.mxu0 %v142
    %163 = vmatprep.subr.bf16.mxu0 0
    %164 = vmatpush1.bf16.msra.mxu0 %v143
    %165 = vmatprep.subr.bf16.mxu0 0
    %166 = vmatpush1.bf16.msra.mxu0 %v144
    %167 = vmatprep.subr.bf16.mxu0 0
    %168 = vmatpush1.bf16.msra.mxu0 %v145
    %169 = vmatprep.subr.bf16.mxu0 0
    %170 = vmatpush1.bf16.msra.mxu0 %v146
    %171 = vmatprep.subr.bf16.mxu0 0
    %172 = vmatpush1.bf16.msra.mxu0 0
    %173 = vmatprep.subr.bf16.mxu0 0
    %174 = vmatpush1.bf16.msra.mxu0 0
    %175 = vmatprep.subr.bf16.mxu0 0
    %176 = vmatpush1.bf16.msra.mxu0 0
    %177 = vmatprep.subr.bf16.mxu0 0
    %178 = vmatpush1.bf16.msra.mxu0 0
    %179 = vmatprep.subr.bf16.mxu0 0
    %180 = vmatpush1.bf16.msra.mxu0 0
    %181 = vmatprep.subr.bf16.mxu0 0
    %182 = vmatpush1.bf16.msra.mxu0 0
    %183 = vmatprep.subr.bf16.mxu0 0
    %184 = vmatpush1.bf16.msra.mxu0 0
    %185 = vmatprep.subr.bf16.mxu0 0
    %186 = vmatpush1.bf16.msra.mxu0 0
    %187 = vmatprep.mubr.bf16.mxu0 0
    %188 = vmatmul.mubr.bf16.gmra.mrb[0].mxu0 %v105
    %v189 = vpop.f32.mrb[0].mxu0
    %v190 = vadd.f32 %v99, %v189
    %v191 = vpop.f32.mrb[0].mxu0
    %v192 = vpop.f32.mrb[0].mxu0
    %v193 = vadd.f32 %v99, %v192
    %v194 = vpop.f32.mrb[0].mxu0
    %195 = vdwg.mxu0
    %v196 = vmax.f32 %v190, 0.0
    %v197 = vmax.f32 %v193, 0.0
    %v198 = vld [vmem:[#allocation8] sm:$0xff]
    %v199 = vld [vmem:[#allocation8 + $0x8] sm:$0xff]
    %v200 = vpack.c.bf16 %v197, %v196
    %v201 = vld [vmem:[#allocation7] sm:$0xf]
    %v202 = vld [vmem:[#allocation7 + $0x4] sm:$0xf]
    %v203 = vld [vmem:[#allocation7 + $0x8] sm:$0xf]
    %v204 = vld [vmem:[#allocation7 + $0xc] sm:$0xf]
    %v205 = vld [vmem:[#allocation7 + $0x10] sm:$0xf]
    %v206 = vld [vmem:[#allocation7 + $0x14] sm:$0xf]
    %v207 = vld [vmem:[#allocation7 + $0x18] sm:$0xf]
    %v208 = vld [vmem:[#allocation7 + $0x1c] sm:$0xf]
    %v209 = vld [vmem:[#allocation7 + $0x20] sm:$0xf]
    %v210 = vld [vmem:[#allocation7 + $0x24] sm:$0xf]
    %v211 = vld [vmem:[#allocation7 + $0x28] sm:$0xf]
    %v212 = vld [vmem:[#allocation7 + $0x2c] sm:$0xf]
    %v213 = vld [vmem:[#allocation7 + $0x30] sm:$0xf]
    %v214 = vld [vmem:[#allocation7 + $0x34] sm:$0xf]
    %v215 = vld [vmem:[#allocation7 + $0x38] sm:$0xf]
    %v216 = vld [vmem:[#allocation7 + $0x3c] sm:$0xf]
    %v233 = vunpack.c.l.b16 %v201
    %v234 = vunpack.c.l.b16 %v202
    %v235 = vunpack.c.l.b16 %v203
    %v236 = vunpack.c.l.b16 %v204
    %v237 = vunpack.c.l.b16 %v205
    %v238 = vunpack.c.l.b16 %v206
    %v239 = vunpack.c.l.b16 %v207
    %v240 = vunpack.c.l.b16 %v208
    %v241 = vunpack.c.l.b16 %v209
    %v242 = vunpack.c.l.b16 %v210
    %v243 = vunpack.c.l.b16 %v211
    %v244 = vunpack.c.l.b16 %v212
    %v245 = vunpack.c.l.b16 %v213
    %v246 = vunpack.c.l.b16 %v214
    %v247 = vunpack.c.l.b16 %v215
    %v248 = vunpack.c.l.b16 %v216
    %v249 = vpack.c.b16 %v234, %v233
    %v250 = vpack.c.b16 %v236, %v235
    %v251 = vpack.c.b16 %v238, %v237
    %v252 = vpack.c.b16 %v240, %v239
    %v253 = vpack.c.b16 %v242, %v241
    %v254 = vpack.c.b16 %v244, %v243
    %v255 = vpack.c.b16 %v246, %v245
    %v256 = vpack.c.b16 %v248, %v247
    %265 = vmatprep.subr.bf16.mxu0 0
    %266 = vmatpush1.bf16.msra.mxu0 %v249
    %267 = vmatprep.subr.bf16.mxu0 0
    %268 = vmatpush1.bf16.msra.mxu0 %v250
    %269 = vmatprep.subr.bf16.mxu0 0
    %270 = vmatpush1.bf16.msra.mxu0 %v251
    %271 = vmatprep.subr.bf16.mxu0 0
    %272 = vmatpush1.bf16.msra.mxu0 %v252
    %273 = vmatprep.subr.bf16.mxu0 0
    %274 = vmatpush1.bf16.msra.mxu0 %v253
    %275 = vmatprep.subr.bf16.mxu0 0
    %276 = vmatpush1.bf16.msra.mxu0 %v254
    %277 = vmatprep.subr.bf16.mxu0 0
    %278 = vmatpush1.bf16.msra.mxu0 %v255
    %279 = vmatprep.subr.bf16.mxu0 0
    %280 = vmatpush1.bf16.msra.mxu0 %v256
    %281 = vmatprep.subr.bf16.mxu0 0
    %282 = vmatpush1.bf16.msra.mxu0 0
    %283 = vmatprep.subr.bf16.mxu0 0
    %284 = vmatpush1.bf16.msra.mxu0 0
    %285 = vmatprep.subr.bf16.mxu0 0
    %286 = vmatpush1.bf16.msra.mxu0 0
    %287 = vmatprep.subr.bf16.mxu0 0
    %288 = vmatpush1.bf16.msra.mxu0 0
    %289 = vmatprep.subr.bf16.mxu0 0
    %290 = vmatpush1.bf16.msra.mxu0 0
    %291 = vmatprep.subr.bf16.mxu0 0
    %292 = vmatpush1.bf16.msra.mxu0 0
    %293 = vmatprep.subr.bf16.mxu0 0
    %294 = vmatpush1.bf16.msra.mxu0 0
    %295 = vmatprep.subr.bf16.mxu0 0
    %296 = vmatpush1.bf16.msra.mxu0 0
    %297 = vmatprep.mubr.bf16.mxu0 0
    %298 = vmatmul.mubr.bf16.gmra.mrb[0].mxu0 %v200
    %v299 = vpop.f32.mrb[0].mxu0
    %v300 = vadd.f32 0.0, %v299
    %v301 = vpop.f32.mrb[0].mxu0
    %v302 = vpop.f32.mrb[0].mxu0
    %v303 = vadd.f32 0.0, %v302
    %v304 = vpop.f32.mrb[0].mxu0
    %305 = vdwg.mxu0
    %v306 = vadd.f32 %v198, %v300
    %v307 = vadd.f32 %v199, %v303
    %308 = vst [vmem:[#allocation8] sm:$0xff] %v306
    %309 = vst [vmem:[#allocation8 + $0x8] sm:$0xff] %v307
    // Predicated region
    $region38: #{tpu_custom_call.1} parent=1 // pred_check
      _
    $region39: #{tpu_custom_call.1} parent=1 // pred_check_branch
      %311 = sbr.rel (0) target = $region41
    $region40: #{tpu_custom_call.1} parent=1 // pred_region
      %s313 = ssub.s32 256, 256
      %314 = vsyncadd [#allocation4], %s313
      %s315 = sshll.u32 [#allocation8], 4
      %s316 = int_to_ptr.vmem [resolvable:$true] %s315
      %321 = dma.vmem_to_hbm [thread:$0]  %s316, 256, %s5, [#allocation4], 128, 128, 8
    $region41: #{tpu_custom_call.1} parent=1 // pred_fallthru
      _
    // Predicated region
    $region42: #{tpu_custom_call.1} parent=1 // pred_check
      _
    $region43: #{tpu_custom_call.1} parent=1 // pred_check_branch
      %323 = sbr.rel (0) target = $region45
    $region44: #{tpu_custom_call.1} parent=1 // pred_region
      %324 = dma.done [#allocation4], 256
    $region45: #{tpu_custom_call.1} parent=1 // pred_fallthru
      _
    %325 = vsyncpa [#allocation3], 1
    %326 = vsyncpa [#allocation6], 1
    %327 = vsyncpa [#allocation4], 1

</llo_original>
